<compile_context>
chip_gen: v6e
topology: v6e:2x2x1
jax: 0.10.0
libtpu: 0.0.40
codegen_flags: <defaults>
</compile_context>

<pallas_src>
import functools

import jax
import jax.numpy as jnp
from jax.experimental import pallas as pl
from jax.experimental.pallas import tpu as pltpu


def _round_up(a: int, b: int) -> int:
    return -(-a // b) * b


def _cdiv(a: int, b: int) -> int:
    return -(-a // b)


def _choose_col_tile(hw_padded: int, cap: int) -> int:
    """Largest multiple-of-128 divisor of hw_padded not exceeding cap."""
    if hw_padded <= cap:
        return hw_padded
    best = 128
    d = 128
    while d <= cap:
        if hw_padded % d == 0:
            best = d
        d += 128
    return best


def _implicit_mul_kernel(scale_ref, x_ref, o_ref, *, row_tile):
    """out = scale * x, computed in f32.

    scale_ref: either (row_tile, 1) per-block scale, or a resident (Rp, 1)
               full-column block (sliced per row-block inside the kernel).
    x_ref/o_ref: (row_tile, col_tile)
    """
    if scale_ref.shape[0] == row_tile:
        scale = scale_ref[...]                                   # (row_tile, 1) f32
    else:
        i = pl.program_id(0)
        r0 = pl.multiple_of(i * row_tile, row_tile)
        scale = scale_ref[pl.ds(r0, row_tile), :]                # resident, sliced
    o_ref[...] = (scale * x_ref[...].astype(jnp.float32)).astype(o_ref.dtype)


def implicit_m(
    x,
    implicit,
    *,
    target_block_bytes=2 * 1024 * 1024,   # ~2 MiB x-block: pipelined, VMEM-safe on v5e/v6e/v7x
    max_col_tile=4096,
    donate_x=False,
):
    """ImplicitM forward: implicit * x.

    x:        (N, C, H, W)  float dtype (f32 / bf16 / ...)
    implicit: (1, C, 1, 1)  learned per-channel multiplier (any float dtype)
    returns:  (N, C, H, W)  same dtype as x
    """
    N, C, H, W = x.shape
    HW = H * W
    R = N * C
    dtype = x.dtype
    itemsize = jnp.dtype(dtype).itemsize
    sub = max(8, 32 // itemsize)          # sublane multiple: 8 f32, 16 bf16, 32 int8

    # ---- tiling ----------------------------------------------------------
    # Lane-dense last dim: pad HW up to a multiple of 128 if needed.
    HWp = _round_up(HW, 128)
    col_tile = _choose_col_tile(HWp, max_col_tile)

    # Row tile targeting ~target_block_bytes per x block, sublane-aligned,
    # with row padding bounded to < sub per row-block.
    rows_cap = max(sub, (target_block_bytes // (col_tile * itemsize)) // sub * sub)
    n_row_blocks = _cdiv(R, rows_cap)
    row_tile = _round_up(_cdiv(R, n_row_blocks), sub)
    Rp = n_row_blocks * row_tile

    # ---- glue: flatten + pad + per-row scale ------------------------------
    x2 = x.reshape(R, HW)
    if (Rp != R) or (HWp != HW):
        x2 = jnp.pad(x2, ((0, Rp - R), (0, HWp - HW)))

    scale_rows = jnp.broadcast_to(
        implicit.reshape(1, C).astype(jnp.float32), (N, C)
    ).reshape(R, 1)
    if Rp != R:
        scale_rows = jnp.pad(scale_rows, ((0, Rp - R), (0, 0)))

    # Keep the (Rp, 1) scale column resident in VMEM (single DMA, index_map
    # pinned to (0, 0)) unless it would be too large; then fall back to a
    # per-row-block (row_tile, 1) spec (still only re-fetched when i changes).
    # Padded VMEM footprint of a (Rp, 1) f32 column is ~Rp * 512 bytes.
    scale_resident = (Rp * 512) <= (2 * 1024 * 1024)
    if scale_resident:
        scale_spec = pl.BlockSpec((Rp, 1), lambda i, j: (0, 0))
    else:
        scale_spec = pl.BlockSpec((row_tile, 1), lambda i, j: (i, 0))

    grid = (Rp // row_tile, HWp // col_tile)

    out2 = pl.pallas_call(
        functools.partial(_implicit_mul_kernel, row_tile=row_tile),
        out_shape=jax.ShapeDtypeStruct((Rp, HWp), dtype),
        grid_spec=pltpu.PrefetchScalarGridSpec(
            num_scalar_prefetch=0,
            grid=grid,
            in_specs=[
                scale_spec,
                pl.BlockSpec((row_tile, col_tile), lambda i, j: (i, j)),
            ],
            out_specs=pl.BlockSpec((row_tile, col_tile), lambda i, j: (i, j)),
        ),
        compiler_params=pltpu.CompilerParams(
            dimension_semantics=("parallel", "parallel"),
        ),
        input_output_aliases=({1: 0} if donate_x else {}),
    )(scale_rows, x2)

    if (Rp != R) or (HWp != HW):
        out2 = out2[:R, :HW]
    return out2.reshape(N, C, H, W)


if __name__ == "__main__":
    key = jax.random.PRNGKey(0)
    k1, k2, k3, k4 = jax.random.split(key, 4)

    def ref_implicit_m(x, implicit):
        return (implicit.astype(jnp.float32) * x.astype(jnp.float32)).astype(x.dtype)

    # Case 1: tiny f32, lane-aligned HW (16*16 = 256)
    N, C, H, W = 2, 4, 16, 16
    implicit1 = 1.0 + 0.02 * jax.random.normal(k1, (1, C, 1, 1), dtype=jnp.float32)
    x1 = jax.random.normal(k2, (N, C, H, W), dtype=jnp.float32)
    out1 = jax.block_until_ready(implicit_m(x1, implicit1))
    ref1 = ref_implicit_m(x1, implicit1)
    assert out1.shape == x1.shape and out1.dtype == x1.dtype
    assert jnp.allclose(out1, ref1, atol=1e-6, rtol=1e-6)

    # Case 2: detector-head-like channels (4*reg_max = 64), non-128-multiple
    # HW (10*10 = 100 -> padded to 128), bf16 activations (f32 promotion path).
    N, C, H, W = 2, 64, 10, 10
    implicit2 = 1.0 + 0.02 * jax.random.normal(k3, (1, C, 1, 1), dtype=jnp.float32)
    x2 = jax.random.normal(k4, (N, C, H, W), dtype=jnp.float32).astype(jnp.bfloat16)
    out2 = jax.block_until_ready(implicit_m(x2, implicit2))
    ref2 = ref_implicit_m(x2, implicit2)
    assert out2.shape == x2.shape and out2.dtype == x2.dtype
    assert jnp.allclose(out2.astype(jnp.float32), ref2.astype(jnp.float32),
                        atol=1e-2, rtol=1e-2)

    print("KERNEL_OK")
</pallas_src>

<mosaic_0001>
module attributes {stable_mosaic.version = 11 : i64} {
  func.func @_implicit_mul_kernel(%arg0: i32, %arg1: i32, %arg2: memref<8x1xf32, #tpu.memory_space<vmem>>, %arg3: memref<8x256xf32, #tpu.memory_space<vmem>>, %arg4: memref<8x256xf32, #tpu.memory_space<vmem>>) attributes {dimension_semantics = [#tpu.dimension_semantics<parallel>, #tpu.dimension_semantics<parallel>], iteration_bounds = array<i64: 1, 1>, scalar_prefetch = 0 : i64, scratch_operands = 0 : i64, tpu.core_type = #tpu.core_type<tc>, window_params = [{pipeline_mode = #tpu.pipeline_mode<synchronous>, transform_indices = @transform_0, window_bounds = array<i64: 8, 1>}, {transform_indices = @transform_1, window_bounds = array<i64: 8, 256>}, {transform_indices = @transform_2, window_bounds = array<i64: 8, 256>}]} {
    %c0 = arith.constant 0 : index
    %c0_0 = arith.constant 0 : index
    %0 = vector.load %arg2[%c0, %c0_0] : memref<8x1xf32, #tpu.memory_space<vmem>>, vector<8x1xf32>
    %c0_1 = arith.constant 0 : index
    %c0_2 = arith.constant 0 : index
    %1 = vector.load %arg3[%c0_1, %c0_2] : memref<8x256xf32, #tpu.memory_space<vmem>>, vector<8x256xf32>
    %2 = vector.broadcast %0 : vector<8x1xf32> to vector<8x256xf32>
    %3 = arith.mulf %2, %1 : vector<8x256xf32>
    %c0_3 = arith.constant 0 : index
    %c0_4 = arith.constant 0 : index
    %4 = vector.load %arg4[%c0_3, %c0_4] : memref<8x256xf32, #tpu.memory_space<vmem>>, vector<8x256xf32>
    tpu.vector_store %arg4[%c0_3, %c0_4], %3 {strides = array<i32>} : memref<8x256xf32, #tpu.memory_space<vmem>>, vector<8x256xf32>,
    return
  }
  func.func @transform_0(%arg0: i32, %arg1: i32) -> (i32, i32) {
    %c0_i32 = arith.constant 0 : i32
    %c0_i32_0 = arith.constant 0 : i32
    %c0_i32_1 = arith.constant 0 : i32
    return %c0_i32, %c0_i32_0 : i32, i32
  }
  func.func @transform_1(%arg0: i32, %arg1: i32) -> (i32, i32) {
    %c0_i32 = arith.constant 0 : i32
    return %arg0, %arg1 : i32, i32
  }
  func.func @transform_2(%arg0: i32, %arg1: i32) -> (i32, i32) {
    %c0_i32 = arith.constant 0 : i32
    return %arg0, %arg1 : i32, i32
  }
}

</mosaic_0001>

<llo_original>
// kernel: tpu_custom_call.1
$region0: #{tpu_custom_call.1}
  #allocation0 [shape = 'u32[]', space=smem, size = 0x4, offset = 0x4, fixed_abs, tag = 'smem constant byte address 0x4 - core index']
  #allocation1 [shape = 'u32[144,128]{1,0:T(1,128)}', space=vmem, size = 0x12000, scoped, tag = 'internal scratch']
  %s0 = inlined_call_operand.vmem [shape: f32[8,1], index: 0, kind: input, shape index: {}]
  %s1 = inlined_call_operand.hbm [shape: f32[8,256], index: 1, kind: input, shape index: {}]
  %s2 = inlined_call_operand.hbm [shape: f32[8,256], index: 2, kind: output, shape index: {}]
  %s3 = sld [smem:[#allocation0]]
  $region22: #{tpu_custom_call.1} parent=0
    _
  %s5 = ssub.s32 1, %s3
  %s6 = scalar_select 0, %s5, %s3
  $region1: #{tpu_custom_call.1} parent=0
    #allocation2 [shape = 'u8[8192]{0}', space=vmem, size = 0x2000, scoped, tag = 'input window, operand 1, single buffered']
    #allocation3 [shape = 's32[1]{0}', space=sflag, size = 0x4, scoped, tag = 'scoped memory for tpu_custom_call.1']
    #allocation4 [shape = 's32[1]{0}', space=sflag, size = 0x4, scoped, tag = 'scoped memory for tpu_custom_call.1']
    #allocation5 [shape = 'u8[8192]{0}', space=vmem, size = 0x2000, scoped, tag = 'output window, operand 0, single buffered']
    %7 = vsyncpa [#allocation3], 0
    %8 = vsyncpa [#allocation4], 0
    // Predicated region
    $region2: #{tpu_custom_call.1} parent=1 // pred_check
      _
    $region3: #{tpu_custom_call.1} parent=1 // pred_check_branch
      %10 = sbr.rel (0) target = $region5
    $region4: #{tpu_custom_call.1} parent=1 // pred_region
      _
    $region5: #{tpu_custom_call.1} parent=1 // pred_fallthru
      _
    // Predicated region
    $region6: #{tpu_custom_call.1} parent=1 // pred_check
      _
    $region7: #{tpu_custom_call.1} parent=1 // pred_check_branch
      %12 = sbr.rel (0) target = $region9
    $region8: #{tpu_custom_call.1} parent=1 // pred_region
      %s14 = ssub.s32 256, 256
      %15 = vsyncadd [#allocation3], %s14
      %s17 = sshll.u32 [#allocation2], 4
      %s18 = int_to_ptr.vmem [resolvable:$true] %s17
      %20 = dma.hbm_to_vmem [thread:$0]  %s1, 256, %s18, [#allocation3]
    $region9: #{tpu_custom_call.1} parent=1 // pred_fallthru
      _
    // Predicated region
    $region10: #{tpu_custom_call.1} parent=1 // pred_check
      _
    $region11: #{tpu_custom_call.1} parent=1 // pred_check_branch
      %22 = sbr.rel (0) target = $region13
    $region12: #{tpu_custom_call.1} parent=1 // pred_region
      %23 = dma.done [#allocation3], 256
    $region13: #{tpu_custom_call.1} parent=1 // pred_fallthru
      _
    %v24 = vld [vmem:[%s0] sm:$0xff]
    %v25 = vld [vmem:[#allocation2] sm:$0xff]
    %v26 = vld [vmem:[#allocation2 + $0x8] sm:$0xff]
    %28 = vset.pattern.permute.xlu0 0
    %29 = vperm.xlu0 %28, %v24
    %v30 = vpop.permute.xlu0 %29
    %v32 = vmul.f32 %v30, %v25
    %v33 = vmul.f32 %v30, %v26
    %34 = vst [vmem:[#allocation5] sm:$0xff] %v32
    %35 = vst [vmem:[#allocation5 + $0x8] sm:$0xff] %v33
    // Predicated region
    $region14: #{tpu_custom_call.1} parent=1 // pred_check
      _
    $region15: #{tpu_custom_call.1} parent=1 // pred_check_branch
      %37 = sbr.rel (0) target = $region17
    $region16: #{tpu_custom_call.1} parent=1 // pred_region
      %s39 = ssub.s32 256, 256
      %40 = vsyncadd [#allocation4], %s39
      %s42 = sshll.u32 [#allocation5], 4
      %s43 = int_to_ptr.vmem [resolvable:$true] %s42
      %45 = dma.vmem_to_hbm [thread:$0]  %s43, 256, %s2, [#allocation4]
    $region17: #{tpu_custom_call.1} parent=1 // pred_fallthru
      _
    // Predicated region
    $region18: #{tpu_custom_call.1} parent=1 // pred_check
      _
    $region19: #{tpu_custom_call.1} parent=1 // pred_check_branch
      %47 = sbr.rel (0) target = $region21
    $region20: #{tpu_custom_call.1} parent=1 // pred_region
      %48 = dma.done [#allocation4], 256
    $region21: #{tpu_custom_call.1} parent=1 // pred_fallthru
      _
    %49 = vsyncpa [#allocation3], 1
    %50 = vsyncpa [#allocation4], 1

</llo_original>
